<compile_context>
chip_gen: v7x
topology: tpu7x:2x2x1
jax: 0.10.0
libtpu: 0.0.40
codegen_flags: <defaults>
</compile_context>

<pallas_src>
import functools
import math

import jax
import jax.numpy as jnp
from jax.experimental import pallas as pl
from jax.experimental.pallas import tpu as pltpu


_ACTS = {
    "sigmoid": jax.nn.sigmoid,
    "tanh": jnp.tanh,
}


def _gates_kernel(w_ref, u_ref, x_ref, h_ref, b_ref, o_ref, *, activations, rows):
    # Two accumulating MXU dots (no HBM concat of [x; hidden]); f32 accumulate,
    # f32 bias add (VPU) + activation (EUP), cast on store.
    pre = jnp.dot(w_ref[...], x_ref[...], preferred_element_type=jnp.float32)
    pre = pre + jnp.dot(u_ref[...], h_ref[...], preferred_element_type=jnp.float32)
    pre = pre + b_ref[...].astype(jnp.float32)

    distinct = tuple(dict.fromkeys(activations))
    if len(distinct) == 1:
        out = _ACTS[distinct[0]](pre)
    else:
        # Per-gate activation: evaluate each distinct activation once over the
        # whole block and select per row-band — avoids sublane-offset slicing
        # constraints on the ref and keeps the store a single unmasked slab.
        row = jax.lax.broadcasted_iota(jnp.int32, pre.shape, 0)
        vals = {a: _ACTS[a](pre) for a in distinct}
        out = jnp.zeros_like(pre)
        for g, act in enumerate(activations):
            in_gate = (row >= g * rows) & (row < (g + 1) * rows)
            out = jnp.where(in_gate, vals[act], out)
    o_ref[...] = out.astype(o_ref.dtype)


def _vmem_budget_bytes():
    # Generation-aware: ~75% of physical VMEM (v5e/v6e: 128 MiB -> ~96 MiB,
    # v7x: 64 MiB -> 48 MiB).  Conservative fallback if the query fails.
    try:
        cap = int(pltpu.get_tpu_info().vmem_capacity_bytes)
    except Exception:
        cap = 64 * 1024 * 1024
    return (cap * 3) // 4


def _round_up(x, m):
    return ((x + m - 1) // m) * m


def _col_tile(cols, bytes_per_col, tile_budget):
    """Largest lane-dense column tile that fits the VMEM tile budget."""
    if cols <= 256:
        return cols  # tiny / overhead-bound regime: one full-extent block
    by_vmem = max(128, (tile_budget // max(bytes_per_col, 1)) // 128 * 128)
    by_split = max(128, _round_up(-(-cols // 2), 128))  # >=2 steps for v7x megacore
    return int(min(by_vmem, by_split, 2048))


def mat_gru_gates(Ws, Us, biases, x, hidden, activations, *,
                  matmul_dtype=jnp.bfloat16, out_dtype=jnp.float32):
    """activation_g(W_g @ x + U_g @ hidden + bias_g) for G gates in ONE call.

    All gates see the same (x, hidden); output is (G, rows, cols) (or
    (rows, cols) when G == 1).
    """
    G = len(Ws)
    assert len(Us) == G and len(biases) == G and len(activations) == G and G >= 1
    rows, cols = biases[0].shape
    for g in range(G):
        assert Ws[g].shape == (rows, rows) and Us[g].shape == (rows, rows)
        assert biases[g].shape == (rows, cols)
        assert activations[g] in _ACTS
    assert x.shape == (rows, cols) and hidden.shape == (rows, cols)

    # Stack gates along M: one resident weight slab, one read of x/hidden.
    # (In a recurrent step loop, hoist these stacks/casts outside the loop.)
    w_stack = (Ws[0] if G == 1 else jnp.concatenate(Ws, axis=0)).astype(matmul_dtype)
    u_stack = (Us[0] if G == 1 else jnp.concatenate(Us, axis=0)).astype(matmul_dtype)
    b_stack = biases[0] if G == 1 else jnp.concatenate(biases, axis=0)
    xm = x.astype(matmul_dtype)
    hm = hidden.astype(matmul_dtype)

    m = G * rows
    mm_b = jnp.dtype(matmul_dtype).itemsize
    bias_b = jnp.dtype(b_stack.dtype).itemsize
    out_b = jnp.dtype(out_dtype).itemsize

    budget = _vmem_budget_bytes()
    resident = 2 * (m * rows * mm_b) * 2                       # W,U slabs (+buffering headroom)
    per_col = 2 * (2 * rows * mm_b + m * bias_b + m * out_b)   # double-buffered x/h/bias/out
    tc = _col_tile(cols, per_col, max(budget - resident, 8 * 1024 * 1024))
    steps = pl.cdiv(cols, tc)

    needed = resident + per_col * tc + (4 << 20)
    vmem_limit = int(min(budget, max(needed, 16 << 20)))

    # Deeper buffering only when the grid is long enough for DMA to be exposed.
    buffered = pl.Buffered(3) if steps >= 4 else None

    def tiled(shape):
        if buffered is None:
            return pl.BlockSpec(shape, lambda j: (0, j))
        return pl.BlockSpec(shape, lambda j: (0, j), pipeline_mode=buffered)

    n_trans = {"sigmoid": 2, "tanh": 1}
    cost = pl.CostEstimate(
        flops=2 * 2 * m * rows * cols,
        transcendentals=sum(n_trans[a] for a in activations) * rows * cols,
        bytes_accessed=(w_stack.size + u_stack.size + xm.size + hm.size) * mm_b
        + b_stack.size * bias_b + m * cols * out_b,
    )

    kernel = functools.partial(_gates_kernel,
                               activations=tuple(activations), rows=rows)
    out = pl.pallas_call(
        kernel,
        out_shape=jax.ShapeDtypeStruct((m, cols), out_dtype),
        grid=(steps,),
        in_specs=[
            pl.BlockSpec((m, rows), lambda j: (0, 0)),   # W slab: resident across cols
            pl.BlockSpec((m, rows), lambda j: (0, 0)),   # U slab: resident across cols
            tiled((rows, tc)),                           # x: tiled over cols
            tiled((rows, tc)),                           # hidden: tiled over cols
            tiled((m, tc)),                              # bias: tiled over cols
        ],
        out_specs=pl.BlockSpec((m, tc), lambda j: (0, j)),
        compiler_params=pltpu.CompilerParams(
            dimension_semantics=("parallel",),
            vmem_limit_bytes=vmem_limit,
        ),
        cost_estimate=cost,
    )(w_stack, u_stack, xm, hm, b_stack)

    if G == 1:
        return out
    return out.reshape(G, rows, cols)


def mat_gru_gate(W, U, bias, x, hidden, *, activation="sigmoid",
                 matmul_dtype=jnp.bfloat16, out_dtype=jnp.float32):
    """activation(W @ x + U @ hidden + bias)  —  mat_GRU_gate.forward."""
    return mat_gru_gates([W], [U], [bias], x, hidden, [activation],
                         matmul_dtype=matmul_dtype, out_dtype=out_dtype)


def init_params(key, rows, cols):
    """Deterministic re-implementation of mat_GRU_gate.__init__ param init."""
    kW, kU = jax.random.split(key, 2)
    stdv = 1.0 / math.sqrt(rows)  # t.size(1) == rows for W and U
    W = jax.random.uniform(kW, (rows, rows), jnp.float32, -stdv, stdv)
    U = jax.random.uniform(kU, (rows, rows), jnp.float32, -stdv, stdv)
    bias = jnp.zeros((rows, cols), jnp.float32)
    return W, U, bias


if __name__ == "__main__":
    # Small shapes consistent with the module; cols=128 keeps the output slab
    # lane-dense (unmasked vst).
    rows, cols = 32, 128

    key = jax.random.PRNGKey(0)
    kp1, kp2, kp3, kx, kh = jax.random.split(key, 5)
    Wz, Uz, bz = init_params(kp1, rows, cols)   # "update" gate
    Wr, Ur, br = init_params(kp2, rows, cols)   # "reset" gate
    Wh, Uh, bh = init_params(kp3, rows, cols)   # "h-tilde" gate
    x = jax.random.normal(kx, (rows, cols), jnp.float32)
    hidden = jax.random.normal(kh, (rows, cols), jnp.float32)

    def ref_f32(W, U, b, act):
        return _ACTS[act](W @ x + U @ hidden + b)

    def ref_bf16(W, U, b, act):
        pre = (jnp.dot(W.astype(jnp.bfloat16), x.astype(jnp.bfloat16),
                       preferred_element_type=jnp.float32)
               + jnp.dot(U.astype(jnp.bfloat16), hidden.astype(jnp.bfloat16),
                         preferred_element_type=jnp.float32) + b)
        return _ACTS[act](pre)

    ok = True

    # 1) Single gate (module-equivalent call), bf16 MXU operands.
    for (W, U, b), act in (((Wz, Uz, bz), "sigmoid"), ((Wh, Uh, bh), "tanh")):
        out = jax.block_until_ready(mat_gru_gate(W, U, b, x, hidden, activation=act))
        assert out.shape == (rows, cols)
        ok &= bool(jnp.allclose(out, ref_bf16(W, U, b, act), atol=2e-3, rtol=2e-3))
        ok &= bool(jnp.allclose(out, ref_f32(W, U, b, act), atol=5e-2, rtol=5e-2))

    # 2) Single gate, f32-operand fallback (module-exact semantics path).
    out32 = jax.block_until_ready(
        mat_gru_gate(Wz, Uz, bz, x, hidden, activation="sigmoid",
                     matmul_dtype=jnp.float32))
    ok &= bool(jnp.allclose(out32, ref_f32(Wz, Uz, bz, "sigmoid"),
                            atol=1e-2, rtol=1e-2))

    # 3) Fused multi-gate call: three gates evaluated on the same x/hidden in
    #    one pallas_call.  (In the full EvolveGCN cell, h-tilde would take
    #    reset*hidden, so it would come in a second fused call after reset.)
    fused = jax.block_until_ready(
        mat_gru_gates([Wz, Wr, Wh], [Uz, Ur, Uh], [bz, br, bh], x, hidden,
                      ["sigmoid", "sigmoid", "tanh"]))
    assert fused.shape == (3, rows, cols)
    for g, ((W, U, b), act) in enumerate((((Wz, Uz, bz), "sigmoid"),
                                          ((Wr, Ur, br), "sigmoid"),
                                          ((Wh, Uh, bh), "tanh"))):
        ok &= bool(jnp.allclose(fused[g], ref_f32(W, U, b, act),
                                atol=5e-2, rtol=5e-2))

    assert ok
    print("KERNEL_OK")
</pallas_src>

<mosaic_0001>
module attributes {stable_mosaic.version = 11 : i64} {
  func.func @_gates_kernel(%arg0: i32, %arg1: memref<32x32xbf16, #tpu.memory_space<vmem>>, %arg2: memref<32x32xbf16, #tpu.memory_space<vmem>>, %arg3: memref<32x128xbf16, #tpu.memory_space<vmem>>, %arg4: memref<32x128xbf16, #tpu.memory_space<vmem>>, %arg5: memref<32x128xf32, #tpu.memory_space<vmem>>, %arg6: memref<32x128xf32, #tpu.memory_space<vmem>>) attributes {dimension_semantics = [#tpu.dimension_semantics<parallel>], iteration_bounds = array<i64: 1>, scalar_prefetch = 0 : i64, scratch_operands = 0 : i64, tpu.core_type = #tpu.core_type<tc>, window_params = [{pipeline_mode = #tpu.pipeline_mode<synchronous>, transform_indices = @transform_0, window_bounds = array<i64: 32, 32>}, {pipeline_mode = #tpu.pipeline_mode<synchronous>, transform_indices = @transform_1, window_bounds = array<i64: 32, 32>}, {transform_indices = @transform_2, window_bounds = array<i64: 32, 128>}, {transform_indices = @transform_3, window_bounds = array<i64: 32, 128>}, {transform_indices = @transform_4, window_bounds = array<i64: 32, 128>}, {transform_indices = @transform_5, window_bounds = array<i64: 32, 128>}]} {
    %c0 = arith.constant 0 : index
    %c0_0 = arith.constant 0 : index
    %0 = vector.load %arg1[%c0, %c0_0] : memref<32x32xbf16, #tpu.memory_space<vmem>>, vector<32x32xbf16>
    %c0_1 = arith.constant 0 : index
    %c0_2 = arith.constant 0 : index
    %1 = vector.load %arg3[%c0_1, %c0_2] : memref<32x128xbf16, #tpu.memory_space<vmem>>, vector<32x128xbf16>
    %cst = arith.constant dense<0.000000e+00> : vector<32x128xf32>
    %2 = tpu.matmul %0, %1, %cst {dimension_numbers = #tpu.dot_dimension_numbers<[1], [0], [0], [1], [0, 0, 1, 1], [], []>} : vector<32x32xbf16>, vector<32x128xbf16>, vector<32x128xf32> -> vector<32x128xf32>
    %c0_3 = arith.constant 0 : index
    %c0_4 = arith.constant 0 : index
    %3 = vector.load %arg2[%c0_3, %c0_4] : memref<32x32xbf16, #tpu.memory_space<vmem>>, vector<32x32xbf16>
    %c0_5 = arith.constant 0 : index
    %c0_6 = arith.constant 0 : index
    %4 = vector.load %arg4[%c0_5, %c0_6] : memref<32x128xbf16, #tpu.memory_space<vmem>>, vector<32x128xbf16>
    %cst_7 = arith.constant dense<0.000000e+00> : vector<32x128xf32>
    %5 = tpu.matmul %3, %4, %cst_7 {dimension_numbers = #tpu.dot_dimension_numbers<[1], [0], [0], [1], [0, 0, 1, 1], [], []>} : vector<32x32xbf16>, vector<32x128xbf16>, vector<32x128xf32> -> vector<32x128xf32>
    %6 = arith.addf %2, %5 : vector<32x128xf32>
    %c0_8 = arith.constant 0 : index
    %c0_9 = arith.constant 0 : index
    %7 = vector.load %arg5[%c0_8, %c0_9] : memref<32x128xf32, #tpu.memory_space<vmem>>, vector<32x128xf32>
    %8 = arith.addf %6, %7 : vector<32x128xf32>
    %9 = arith.negf %8 : vector<32x128xf32>
    %10 = math.exp %9 : vector<32x128xf32>
    %cst_10 = arith.constant 1.000000e+00 : f32
    %11 = vector.broadcast %cst_10 : f32 to vector<32x128xf32>
    %12 = arith.addf %11, %10 : vector<32x128xf32>
    %13 = arith.divf %11, %12 : vector<32x128xf32>
    %c0_11 = arith.constant 0 : index
    %c0_12 = arith.constant 0 : index
    %14 = vector.load %arg6[%c0_11, %c0_12] : memref<32x128xf32, #tpu.memory_space<vmem>>, vector<32x128xf32>
    tpu.vector_store %arg6[%c0_11, %c0_12], %13 {strides = array<i32>} : memref<32x128xf32, #tpu.memory_space<vmem>>, vector<32x128xf32>,
    return
  }
  func.func @transform_0(%arg0: i32) -> (i32, i32) {
    %c0_i32 = arith.constant 0 : i32
    %c0_i32_0 = arith.constant 0 : i32
    %c0_i32_1 = arith.constant 0 : i32
    return %c0_i32, %c0_i32_0 : i32, i32
  }
  func.func @transform_1(%arg0: i32) -> (i32, i32) {
    %c0_i32 = arith.constant 0 : i32
    %c0_i32_0 = arith.constant 0 : i32
    %c0_i32_1 = arith.constant 0 : i32
    return %c0_i32, %c0_i32_0 : i32, i32
  }
  func.func @transform_2(%arg0: i32) -> (i32, i32) {
    %c0_i32 = arith.constant 0 : i32
    %c0_i32_0 = arith.constant 0 : i32
    return %c0_i32, %arg0 : i32, i32
  }
  func.func @transform_3(%arg0: i32) -> (i32, i32) {
    %c0_i32 = arith.constant 0 : i32
    %c0_i32_0 = arith.constant 0 : i32
    return %c0_i32, %arg0 : i32, i32
  }
  func.func @transform_4(%arg0: i32) -> (i32, i32) {
    %c0_i32 = arith.constant 0 : i32
    %c0_i32_0 = arith.constant 0 : i32
    return %c0_i32, %arg0 : i32, i32
  }
  func.func @transform_5(%arg0: i32) -> (i32, i32) {
    %c0_i32 = arith.constant 0 : i32
    %c0_i32_0 = arith.constant 0 : i32
    return %c0_i32, %arg0 : i32, i32
  }
}

</mosaic_0001>

<llo_original>
// kernel: tpu_custom_call.1
$region0: #{tpu_custom_call.1}
  #allocation0 [shape = 'u32[]', space=smem, size = 0x4, offset = 0x4, fixed_abs, tag = 'smem constant byte address 0x4 - core index']
  #allocation1 [shape = 'u32[144,128]{1,0:T(1,128)}', space=vmem, size = 0x12000, scoped, tag = 'internal scratch']
  %s0 = inlined_call_operand.hbm [shape: bf16[32,32], index: 0, kind: input, shape index: {}]
  %s1 = inlined_call_operand.hbm [shape: bf16[32,32], index: 1, kind: input, shape index: {}]
  %s2 = inlined_call_operand.hbm [shape: bf16[32,128], index: 2, kind: input, shape index: {}]
  %s3 = inlined_call_operand.hbm [shape: bf16[32,128], index: 3, kind: input, shape index: {}]
  %s4 = inlined_call_operand.hbm [shape: f32[32,128], index: 4, kind: input, shape index: {}]
  %s5 = inlined_call_operand.hbm [shape: f32[32,128], index: 5, kind: output, shape index: {}]
  %s6 = sld [smem:[#allocation0]]
  $region50: #{tpu_custom_call.1} parent=0
    _
  %s8 = ssub.s32 1, %s6
  %s9 = scalar_select 0, %s8, %s6
  $region1: #{tpu_custom_call.1} parent=0
    #allocation2 [shape = 'u8[8192]{0}', space=vmem, size = 0x2000, scoped, tag = 'input window, operand 0, single buffered']
    #allocation3 [shape = 's32[1]{0}', space=sflag, size = 0x4, scoped, tag = 'scoped memory for tpu_custom_call.1']
    #allocation4 [shape = 's32[1]{0}', space=sflag, size = 0x4, scoped, tag = 'scoped memory for tpu_custom_call.1']
    #allocation5 [shape = 'u8[8192]{0}', space=vmem, size = 0x2000, scoped, tag = 'input window, operand 1, single buffered']
    #allocation6 [shape = 's32[1]{0}', space=sflag, size = 0x4, scoped, tag = 'scoped memory for tpu_custom_call.1']
    #allocation7 [shape = 'u8[8192]{0}', space=vmem, size = 0x2000, scoped, tag = 'input window, operand 2, single buffered']
    #allocation8 [shape = 'u8[8192]{0}', space=vmem, size = 0x2000, scoped, tag = 'input window, operand 3, single buffered']
    #allocation9 [shape = 's32[1]{0}', space=sflag, size = 0x4, scoped, tag = 'scoped memory for tpu_custom_call.1']
    #allocation10 [shape = 'u8[16384]{0}', space=vmem, size = 0x4000, scoped, tag = 'input window, operand 4, single buffered']
    #allocation11 [shape = 'u8[16384]{0}', space=vmem, size = 0x4000, scoped, tag = 'output window, operand 0, single buffered']
    %10 = vsyncpa [#allocation3], 0
    %11 = vsyncpa [#allocation6], 0
    %12 = vsyncpa [#allocation9], 0
    %13 = vsyncpa [#allocation4], 0
    // Predicated region
    $region2: #{tpu_custom_call.1} parent=1 // pred_check
      _
    $region3: #{tpu_custom_call.1} parent=1 // pred_check_branch
      %15 = sbr.rel (0) target = $region5
    $region4: #{tpu_custom_call.1} parent=1 // pred_region
      %s17 = ssub.s32 256, 256
      %18 = vsyncadd [#allocation3], %s17
      %s19 = sshll.u32 [#allocation2], 4
      %s20 = int_to_ptr.vmem [resolvable:$true] %s19
      %25 = dma.hbm_to_vmem [thread:$0]  %s0, 256, %s20, [#allocation3], 64, 64, 4
    $region5: #{tpu_custom_call.1} parent=1 // pred_fallthru
      _
    // Predicated region
    $region6: #{tpu_custom_call.1} parent=1 // pred_check
      _
    $region7: #{tpu_custom_call.1} parent=1 // pred_check_branch
      %27 = sbr.rel (0) target = $region9
    $region8: #{tpu_custom_call.1} parent=1 // pred_region
      %s29 = ssub.s32 256, 256
      %30 = vsyncadd [#allocation6], %s29
      %s31 = sshll.u32 [#allocation5], 4
      %s32 = int_to_ptr.vmem [resolvable:$true] %s31
      %37 = dma.hbm_to_vmem [thread:$0]  %s1, 256, %s32, [#allocation6], 64, 64, 4
    $region9: #{tpu_custom_call.1} parent=1 // pred_fallthru
      _
    // Predicated region
    $region10: #{tpu_custom_call.1} parent=1 // pred_check
      _
    $region11: #{tpu_custom_call.1} parent=1 // pred_check_branch
      %39 = sbr.rel (0) target = $region13
    $region12: #{tpu_custom_call.1} parent=1 // pred_region
      %s41 = ssub.s32 256, 256
      %42 = vsyncadd [#allocation6], %s41
      %s43 = sshll.u32 [#allocation7], 4
      %s44 = int_to_ptr.vmem [resolvable:$true] %s43
      %49 = dma.hbm_to_vmem [thread:$0]  %s2, 256, %s44, [#allocation6], 64, 64, 4
    $region13: #{tpu_custom_call.1} parent=1 // pred_fallthru
      _
    // Predicated region
    $region14: #{tpu_custom_call.1} parent=1 // pred_check
      _
    $region15: #{tpu_custom_call.1} parent=1 // pred_check_branch
      %51 = sbr.rel (0) target = $region17
    $region16: #{tpu_custom_call.1} parent=1 // pred_region
      %s53 = ssub.s32 256, 256
      %54 = vsyncadd [#allocation9], %s53
      %s55 = sshll.u32 [#allocation8], 4
      %s56 = int_to_ptr.vmem [resolvable:$true] %s55
      %61 = dma.hbm_to_vmem [thread:$0]  %s3, 256, %s56, [#allocation9], 64, 64, 4
    $region17: #{tpu_custom_call.1} parent=1 // pred_fallthru
      _
    // Predicated region
    $region18: #{tpu_custom_call.1} parent=1 // pred_check
      _
    $region19: #{tpu_custom_call.1} parent=1 // pred_check_branch
      %63 = sbr.rel (0) target = $region21
    $region20: #{tpu_custom_call.1} parent=1 // pred_region
      %s65 = ssub.s32 512, 512
      %66 = vsyncadd [#allocation9], %s65
      %s67 = sshll.u32 [#allocation10], 4
      %s68 = int_to_ptr.vmem [resolvable:$true] %s67
      %73 = dma.hbm_to_vmem [thread:$0]  %s4, 512, %s68, [#allocation9], 128, 128, 8
    $region21: #{tpu_custom_call.1} parent=1 // pred_fallthru
      _
    // Predicated region
    $region22: #{tpu_custom_call.1} parent=1 // pred_check
      _
    $region23: #{tpu_custom_call.1} parent=1 // pred_check_branch
      %75 = sbr.rel (0) target = $region25
    $region24: #{tpu_custom_call.1} parent=1 // pred_region
      %76 = dma.done [#allocation3], 256
    $region25: #{tpu_custom_call.1} parent=1 // pred_fallthru
      _
    // Predicated region
    $region26: #{tpu_custom_call.1} parent=1 // pred_check
      _
    $region27: #{tpu_custom_call.1} parent=1 // pred_check_branch
      %78 = sbr.rel (0) target = $region29
    $region28: #{tpu_custom_call.1} parent=1 // pred_region
      %79 = dma.done [#allocation6], 256
    $region29: #{tpu_custom_call.1} parent=1 // pred_fallthru
      _
    // Predicated region
    $region30: #{tpu_custom_call.1} parent=1 // pred_check
      _
    $region31: #{tpu_custom_call.1} parent=1 // pred_check_branch
      %81 = sbr.rel (0) target = $region33
    $region32: #{tpu_custom_call.1} parent=1 // pred_region
      %82 = dma.done [#allocation6], 256
    $region33: #{tpu_custom_call.1} parent=1 // pred_fallthru
      _
    // Predicated region
    $region34: #{tpu_custom_call.1} parent=1 // pred_check
      _
    $region35: #{tpu_custom_call.1} parent=1 // pred_check_branch
      %84 = sbr.rel (0) target = $region37
    $region36: #{tpu_custom_call.1} parent=1 // pred_region
      %85 = dma.done [#allocation9], 256
    $region37: #{tpu_custom_call.1} parent=1 // pred_fallthru
      _
    // Predicated region
    $region38: #{tpu_custom_call.1} parent=1 // pred_check
      _
    $region39: #{tpu_custom_call.1} parent=1 // pred_check_branch
      %87 = sbr.rel (0) target = $region41
    $region40: #{tpu_custom_call.1} parent=1 // pred_region
      %88 = dma.done [#allocation9], 512
    $region41: #{tpu_custom_call.1} parent=1 // pred_fallthru
      _
    %v90 = vld [vmem:[#allocation2] sm:$0xf]
    %v91 = vld [vmem:[#allocation2 + $0x4] sm:$0xf]
    %v92 = vld [vmem:[#allocation2 + $0x8] sm:$0xf]
    %v93 = vld [vmem:[#allocation2 + $0xc] sm:$0xf]
    %v94 = vld [vmem:[#allocation7] sm:$0xf]
    %v95 = vld [vmem:[#allocation7 + $0x4] sm:$0xf]
    %v96 = vld [vmem:[#allocation7 + $0x8] sm:$0xf]
    %v97 = vld [vmem:[#allocation7 + $0xc] sm:$0xf]
    %v98 = vld [vmem:[#allocation5] sm:$0xf]
    %v99 = vld [vmem:[#allocation5 + $0x4] sm:$0xf]
    %v100 = vld [vmem:[#allocation5 + $0x8] sm:$0xf]
    %v101 = vld [vmem:[#allocation5 + $0xc] sm:$0xf]
    %v102 = vld [vmem:[#allocation8] sm:$0xf]
    %v103 = vld [vmem:[#allocation8 + $0x4] sm:$0xf]
    %v104 = vld [vmem:[#allocation8 + $0x8] sm:$0xf]
    %v105 = vld [vmem:[#allocation8 + $0xc] sm:$0xf]
    %v110 = vunpack.c.l.b16 %v98
    %v111 = vunpack.c.l.b16 %v99
    %v112 = vunpack.c.l.b16 %v100
    %v113 = vunpack.c.l.b16 %v101
    %v114 = vpack.c.b16 %v111, %v110
    %v115 = vpack.c.b16 %v113, %v112
    %v120 = vunpack.c.l.b16 %v102
    %v121 = vunpack.c.l.b16 %v103
    %v122 = vunpack.c.l.b16 %v104
    %v123 = vunpack.c.l.b16 %v105
    %v124 = vpack.c.b16 %v121, %v120
    %v125 = vpack.c.b16 %v123, %v122
    %vm128 = vcmask 261120
    %v130 = vsel %vm128, %v114, 0
    %v133 = vsel %vm128, %v115, 0
    %135 = vmatprep.subr.bf16.mxu0 0
    %136 = vmatpush1.bf16.msra.mxu0 %v124
    %137 = vmatprep.subr.bf16.mxu0 0
    %138 = vmatpush1.bf16.msra.mxu0 %v125
    %139 = vmatprep.subr.bf16.mxu0 0
    %140 = vmatpush1.bf16.msra.mxu0 0
    %141 = vmatprep.subr.bf16.mxu0 0
    %142 = vmatpush1.bf16.msra.mxu0 0
    %143 = vmatprep.subr.bf16.mxu0 0
    %144 = vmatpush1.bf16.msra.mxu0 0
    %145 = vmatprep.subr.bf16.mxu0 0
    %146 = vmatpush1.bf16.msra.mxu0 0
    %147 = vmatprep.subr.bf16.mxu0 0
    %148 = vmatpush1.bf16.msra.mxu0 0
    %149 = vmatprep.subr.bf16.mxu0 0
    %150 = vmatpush1.bf16.msra.mxu0 0
    %151 = vmatprep.subr.bf16.mxu0 0
    %152 = vmatpush1.bf16.msra.mxu0 0
    %153 = vmatprep.subr.bf16.mxu0 0
    %154 = vmatpush1.bf16.msra.mxu0 0
    %155 = vmatprep.subr.bf16.mxu0 0
    %156 = vmatpush1.bf16.msra.mxu0 0
    %157 = vmatprep.subr.bf16.mxu0 0
    %158 = vmatpush1.bf16.msra.mxu0 0
    %159 = vmatprep.subr.bf16.mxu0 0
    %160 = vmatpush1.bf16.msra.mxu0 0
    %161 = vmatprep.subr.bf16.mxu0 0
    %162 = vmatpush1.bf16.msra.mxu0 0
    %163 = vmatprep.subr.bf16.mxu0 0
    %164 = vmatpush1.bf16.msra.mxu0 0
    %165 = vmatprep.subr.bf16.mxu0 0
    %166 = vmatpush1.bf16.msra.mxu0 0
    %167 = vmatprep.mubr.bf16.mxu0 0
    %168 = vmatmul.mubr.bf16.gmra.mrb[0].mxu0 %v130
    %v169 = vpop.f32.mrb[0].mxu0
    %v170 = vadd.f32 0.0, %v169
    %v171 = vpop.f32.mrb[0].mxu0
    %v172 = vpop.f32.mrb[0].mxu0
    %v173 = vadd.f32 0.0, %v172
    %v174 = vpop.f32.mrb[0].mxu0
    %175 = vmatprep.mubr.bf16.mxu0 0
    %176 = vmatmul.mubr.bf16.gmra.mrb[0].mxu0 %v133
    %v177 = vpop.f32.mrb[0].mxu0
    %v178 = vadd.f32 0.0, %v177
    %v179 = vpop.f32.mrb[0].mxu0
    %v180 = vpop.f32.mrb[0].mxu0
    %v181 = vadd.f32 0.0, %v180
    %v182 = vpop.f32.mrb[0].mxu0
    %183 = vdwg.mxu0
    %v188 = vunpack.c.l.b16 %v90
    %v189 = vunpack.c.l.b16 %v91
    %v190 = vunpack.c.l.b16 %v92
    %v191 = vunpack.c.l.b16 %v93
    %v192 = vpack.c.b16 %v189, %v188
    %v193 = vpack.c.b16 %v191, %v190
    %v198 = vunpack.c.l.b16 %v94
    %v199 = vunpack.c.l.b16 %v95
    %v200 = vunpack.c.l.b16 %v96
    %v201 = vunpack.c.l.b16 %v97
    %v202 = vpack.c.b16 %v199, %v198
    %v203 = vpack.c.b16 %v201, %v200
    %v207 = vsel %vm128, %v192, 0
    %v210 = vsel %vm128, %v193, 0
    %212 = vmatprep.subr.bf16.mxu0 0
    %213 = vmatpush1.bf16.msra.mxu0 %v202
    %214 = vmatprep.subr.bf16.mxu0 0
    %215 = vmatpush1.bf16.msra.mxu0 %v203
    %216 = vmatprep.subr.bf16.mxu0 0
    %217 = vmatpush1.bf16.msra.mxu0 0
    %218 = vmatprep.subr.bf16.mxu0 0
    %219 = vmatpush1.bf16.msra.mxu0 0
    %220 = vmatprep.subr.bf16.mxu0 0
    %221 = vmatpush1.bf16.msra.mxu0 0
    %222 = vmatprep.subr.bf16.mxu0 0
    %223 = vmatpush1.bf16.msra.mxu0 0
    %224 = vmatprep.subr.bf16.mxu0 0
    %225 = vmatpush1.bf16.msra.mxu0 0
    %226 = vmatprep.subr.bf16.mxu0 0
    %227 = vmatpush1.bf16.msra.mxu0 0
    %228 = vmatprep.subr.bf16.mxu0 0
    %229 = vmatpush1.bf16.msra.mxu0 0
    %230 = vmatprep.subr.bf16.mxu0 0
    %231 = vmatpush1.bf16.msra.mxu0 0
    %232 = vmatprep.subr.bf16.mxu0 0
    %233 = vmatpush1.bf16.msra.mxu0 0
    %234 = vmatprep.subr.bf16.mxu0 0
    %235 = vmatpush1.bf16.msra.mxu0 0
    %236 = vmatprep.subr.bf16.mxu0 0
    %237 = vmatpush1.bf16.msra.mxu0 0
    %238 = vmatprep.subr.bf16.mxu0 0
    %239 = vmatpush1.bf16.msra.mxu0 0
    %240 = vmatprep.subr.bf16.mxu0 0
    %241 = vmatpush1.bf16.msra.mxu0 0
    %242 = vmatprep.subr.bf16.mxu0 0
    %243 = vmatpush1.bf16.msra.mxu0 0
    %244 = vmatprep.mubr.bf16.mxu0 0
    %245 = vmatmul.mubr.bf16.gmra.mrb[0].mxu0 %v207
    %v246 = vpop.f32.mrb[0].mxu0
    %v247 = vadd.f32 %v170, %v246
    %v248 = vpop.f32.mrb[0].mxu0
    %v249 = vpop.f32.mrb[0].mxu0
    %v250 = vadd.f32 %v173, %v249
    %v251 = vpop.f32.mrb[0].mxu0
    %252 = vmatprep.mubr.bf16.mxu0 0
    %253 = vmatmul.mubr.bf16.gmra.mrb[0].mxu0 %v210
    %v254 = vpop.f32.mrb[0].mxu0
    %v255 = vadd.f32 %v178, %v254
    %v256 = vpop.f32.mrb[0].mxu0
    %v257 = vpop.f32.mrb[0].mxu0
    %v258 = vadd.f32 %v181, %v257
    %v259 = vpop.f32.mrb[0].mxu0
    %260 = vdwg.mxu0
    %v261 = vld [vmem:[#allocation10] sm:$0xff]
    %v262 = vld [vmem:[#allocation10 + $0x8] sm:$0xff]
    %v263 = vld [vmem:[#allocation10 + $0x10] sm:$0xff]
    %v264 = vld [vmem:[#allocation10 + $0x18] sm:$0xff]
    %v265 = vadd.f32 %v247, %v261
    %v266 = vadd.f32 %v250, %v262
    %v267 = vadd.f32 %v255, %v263
    %v268 = vadd.f32 %v258, %v264
    %v269 = vxor.u32 %v265, 2147483648
    %v270 = vxor.u32 %v266, 2147483648
    %v271 = vxor.u32 %v267, 2147483648
    %v272 = vxor.u32 %v268, 2147483648
    %v273 = vmul.f32 %v269, 1.442695
    %v274 = vpow.pop %v273
    %v275 = vmul.f32 %v270, 1.442695
    %v276 = vpow.pop %v275
    %v277 = vmul.f32 %v271, 1.442695
    %v278 = vpow.pop %v277
    %v279 = vmul.f32 %v272, 1.442695
    %v280 = vpow.pop %v279
    %v281 = vadd.f32 %v274, 1.0
    %v282 = vadd.f32 %v276, 1.0
    %v283 = vadd.f32 %v278, 1.0
    %v284 = vadd.f32 %v280, 1.0
    %v285 = vrcp.pop %v281
    %v286 = vmul.f32 1.0, %v285
    %v287 = vrcp.pop %v282
    %v288 = vmul.f32 1.0, %v287
    %v289 = vrcp.pop %v283
    %v290 = vmul.f32 1.0, %v289
    %v291 = vrcp.pop %v284
    %v292 = vmul.f32 1.0, %v291
    %293 = vst [vmem:[#allocation11] sm:$0xff] %v286
    %294 = vst [vmem:[#allocation11 + $0x8] sm:$0xff] %v288
    %295 = vst [vmem:[#allocation11 + $0x10] sm:$0xff] %v290
    %296 = vst [vmem:[#allocation11 + $0x18] sm:$0xff] %v292
    // Predicated region
    $region42: #{tpu_custom_call.1} parent=1 // pred_check
      _
    $region43: #{tpu_custom_call.1} parent=1 // pred_check_branch
      %298 = sbr.rel (0) target = $region45
    $region44: #{tpu_custom_call.1} parent=1 // pred_region
      %s300 = ssub.s32 512, 512
      %301 = vsyncadd [#allocation4], %s300
      %s302 = sshll.u32 [#allocation11], 4
      %s303 = int_to_ptr.vmem [resolvable:$true] %s302
      %308 = dma.vmem_to_hbm [thread:$0]  %s303, 512, %s5, [#allocation4], 128, 128, 8
    $region45: #{tpu_custom_call.1} parent=1 // pred_fallthru
      _
    // Predicated region
    $region46: #{tpu_custom_call.1} parent=1 // pred_check
      _
    $region47: #{tpu_custom_call.1} parent=1 // pred_check_branch
      %310 = sbr.rel (0) target = $region49
    $region48: #{tpu_custom_call.1} parent=1 // pred_region
      %311 = dma.done [#allocation4], 512
    $region49: #{tpu_custom_call.1} parent=1 // pred_fallthru
      _
    %312 = vsyncpa [#allocation3], 1
    %313 = vsyncpa [#allocation6], 1
    %314 = vsyncpa [#allocation9], 1
    %315 = vsyncpa [#allocation4], 1

</llo_original>
